<compile_context>
chip_gen: v6e
topology: v6e:2x2x1
jax: 0.10.0
libtpu: 0.0.40
codegen_flags: <defaults>
</compile_context>

<pallas_src>
import jax
import jax.numpy as jnp
from jax.experimental import pallas as pl
from jax.experimental.pallas import tpu as pltpu

_LANE = 128
# 4096 rows x 128 lanes x 4 B = 2 MiB per buffer.  Input + output, each
# double-buffered by the auto-pipeline, is ~8 MiB resident -- comfortably
# under the scoped VMEM default on every generation (16 MiB v5e, 32 MiB
# v6e/v7x).
_MAX_TILE_ROWS = 4096


def _silu_kernel(x_ref, o_ref):
    # Upcast so bf16/f16 inputs still do the math in f32 (v5e has no bf16
    # VPU/EUP; Mosaic would widen anyway, this just makes it explicit).
    x = x_ref[...].astype(jnp.float32)
    # SiLU(x) = x * sigmoid(x), with sigmoid(x) = 0.5 * (1 + tanh(x/2)).
    # One EUP transcendental (tanh) + two VALU muls + one add per vreg; the
    # EUP has its own issue slot, so the kernel stays memory-bound.
    hx = 0.5 * x
    y = hx + hx * jnp.tanh(hx)
    o_ref[...] = y.astype(o_ref.dtype)


def lambda_module_forward(x):
    """LambdaModule(lambda x: x * torch.sigmoid(x)) forward as a Pallas kernel.

    Purely elementwise, so the wrapper flattens x to a lane-dense (rows, 128)
    slab, runs the kernel with the largest VMEM-fitting block (ragged final
    block handled by Pallas' out-of-bounds store masking), and reshapes back
    to the original (NCHW) layout.
    """
    orig_shape = x.shape
    orig_dtype = x.dtype
    total = x.size

    # Flatten.  Lane padding only if the element count isn't a multiple of
    # 128 (rare; the demo shape 2*4*16*16 = 16*128 needs no pad, so no extra
    # HBM copies on the hot path).
    flat = x.reshape(-1)
    padded = pl.cdiv(total, _LANE) * _LANE
    if padded != total:
        flat = jnp.pad(flat, (0, padded - total))
    rows = padded // _LANE
    x2d = flat.reshape(rows, _LANE)

    # Largest VMEM-friendly block.  Small inputs (demo: 16 x 128) run as a
    # single grid step (per-step pipeline overhead would otherwise dominate);
    # large inputs tile at _MAX_TILE_ROWS rows with a ragged final block --
    # no row padding, Pallas masks the out-of-bounds part of the last store.
    if rows <= _MAX_TILE_ROWS:
        tile_rows = rows          # full dim -> (8,128) constraint satisfied
    else:
        tile_rows = _MAX_TILE_ROWS  # multiple of 8
    grid = (pl.cdiv(rows, tile_rows),)

    out2d = pl.pallas_call(
        _silu_kernel,
        out_shape=jax.ShapeDtypeStruct((rows, _LANE), orig_dtype),
        grid=grid,
        in_specs=[pl.BlockSpec((tile_rows, _LANE), lambda i: (i, 0))],
        out_specs=pl.BlockSpec((tile_rows, _LANE), lambda i: (i, 0)),
        # "parallel": on v7x a multi-step grid shards across the 2 TensorCores;
        # on v5e/v6e (1 TC) it is a no-op.  The tiny demo shape stays a single
        # step, avoiding pointless cross-core splitting.
        compiler_params=pltpu.CompilerParams(
            dimension_semantics=("parallel",),
        ),
        # NOTE: pass input_output_aliases={0: 0} when this activation replaces
        # its input inside a larger model (saves a full-size HBM allocation);
        # left off here because the demo reuses x for the reference check.
    )(x2d)

    out = out2d.reshape(-1)
    if out.size != total:
        out = out[:total]
    return out.reshape(orig_shape)


if __name__ == "__main__":
    key = jax.random.PRNGKey(0)
    # NCHW input, small shapes: batch=2, channels=4, spatial=16x16.
    x = jax.random.normal(key, (2, 4, 16, 16), dtype=jnp.float32)

    out = jax.block_until_ready(lambda_module_forward(x))

    # Reference: plain-JAX SiLU (same semantics as the wrapped PyTorch
    # lambda x * torch.sigmoid(x)).
    ref = x * jax.nn.sigmoid(x)
    assert out.shape == x.shape and out.dtype == x.dtype
    assert jnp.allclose(out, ref, atol=1e-4, rtol=1e-4), float(
        jnp.max(jnp.abs(out - ref))
    )

    print("KERNEL_OK")
</pallas_src>

<mosaic_0001>
module attributes {stable_mosaic.version = 11 : i64} {
  func.func @_silu_kernel(%arg0: i32, %arg1: memref<16x128xf32, #tpu.memory_space<vmem>>, %arg2: memref<16x128xf32, #tpu.memory_space<vmem>>) attributes {dimension_semantics = [#tpu.dimension_semantics<parallel>], iteration_bounds = array<i64: 1>, scalar_prefetch = 0 : i64, scratch_operands = 0 : i64, tpu.core_type = #tpu.core_type<tc>, window_params = [{transform_indices = @transform_0, window_bounds = array<i64: 16, 128>}, {transform_indices = @transform_1, window_bounds = array<i64: 16, 128>}]} {
    %c0 = arith.constant 0 : index
    %c0_0 = arith.constant 0 : index
    %0 = vector.load %arg1[%c0, %c0_0] : memref<16x128xf32, #tpu.memory_space<vmem>>, vector<16x128xf32>
    %cst = arith.constant 5.000000e-01 : f32
    %1 = vector.broadcast %cst : f32 to vector<16x128xf32>
    %2 = arith.mulf %1, %0 : vector<16x128xf32>
    %3 = math.tanh %2 : vector<16x128xf32>
    %4 = arith.mulf %2, %3 : vector<16x128xf32>
    %5 = arith.addf %2, %4 : vector<16x128xf32>
    %c0_1 = arith.constant 0 : index
    %c0_2 = arith.constant 0 : index
    %6 = vector.load %arg2[%c0_1, %c0_2] : memref<16x128xf32, #tpu.memory_space<vmem>>, vector<16x128xf32>
    tpu.vector_store %arg2[%c0_1, %c0_2], %5 {strides = array<i32>} : memref<16x128xf32, #tpu.memory_space<vmem>>, vector<16x128xf32>,
    return
  }
  func.func @transform_0(%arg0: i32) -> (i32, i32) {
    %c0_i32 = arith.constant 0 : i32
    %c0_i32_0 = arith.constant 0 : i32
    return %arg0, %c0_i32 : i32, i32
  }
  func.func @transform_1(%arg0: i32) -> (i32, i32) {
    %c0_i32 = arith.constant 0 : i32
    %c0_i32_0 = arith.constant 0 : i32
    return %arg0, %c0_i32 : i32, i32
  }
}

</mosaic_0001>

<llo_original>
// kernel: tpu_custom_call.1
$region0: #{tpu_custom_call.1}
  #allocation0 [shape = 'u32[]', space=smem, size = 0x4, offset = 0x4, fixed_abs, tag = 'smem constant byte address 0x4 - core index']
  #allocation1 [shape = 'u32[144,128]{1,0:T(1,128)}', space=vmem, size = 0x12000, scoped, tag = 'internal scratch']
  %s0 = inlined_call_operand.hbm [shape: f32[16,128], index: 0, kind: input, shape index: {}]
  %s1 = inlined_call_operand.hbm [shape: f32[16,128], index: 1, kind: output, shape index: {}]
  %s2 = sld [smem:[#allocation0]]
  $region18: #{tpu_custom_call.1} parent=0
    _
  %s4 = ssub.s32 1, %s2
  %s5 = scalar_select 0, %s4, %s2
  $region1: #{tpu_custom_call.1} parent=0
    #allocation2 [shape = 'u8[8192]{0}', space=vmem, size = 0x2000, scoped, tag = 'input window, operand 0, single buffered']
    #allocation3 [shape = 's32[1]{0}', space=sflag, size = 0x4, scoped, tag = 'scoped memory for tpu_custom_call.1']
    #allocation4 [shape = 's32[1]{0}', space=sflag, size = 0x4, scoped, tag = 'scoped memory for tpu_custom_call.1']
    #allocation5 [shape = 'u8[8192]{0}', space=vmem, size = 0x2000, scoped, tag = 'output window, operand 0, single buffered']
    %6 = vsyncpa [#allocation3], 0
    %7 = vsyncpa [#allocation4], 0
    // Predicated region
    $region2: #{tpu_custom_call.1} parent=1 // pred_check
      _
    $region3: #{tpu_custom_call.1} parent=1 // pred_check_branch
      %9 = sbr.rel (0) target = $region5
    $region4: #{tpu_custom_call.1} parent=1 // pred_region
      %s11 = ssub.s32 256, 256
      %12 = vsyncadd [#allocation3], %s11
      %s13 = sshll.u32 [#allocation2], 4
      %s14 = int_to_ptr.vmem [resolvable:$true] %s13
      %19 = dma.hbm_to_vmem [thread:$0]  %s0, 256, %s14, [#allocation3], 128, 128, 8
    $region5: #{tpu_custom_call.1} parent=1 // pred_fallthru
      _
    // Predicated region
    $region6: #{tpu_custom_call.1} parent=1 // pred_check
      _
    $region7: #{tpu_custom_call.1} parent=1 // pred_check_branch
      %21 = sbr.rel (0) target = $region9
    $region8: #{tpu_custom_call.1} parent=1 // pred_region
      %22 = dma.done [#allocation3], 256
    $region9: #{tpu_custom_call.1} parent=1 // pred_fallthru
      _
    %v23 = vld [vmem:[#allocation2] sm:$0xff]
    %v24 = vld [vmem:[#allocation2 + $0x8] sm:$0xff]
    %v25 = vmul.f32 %v23, 0.5
    %v26 = vmul.f32 %v24, 0.5
    %v27 = vtanh.pop %v25
    %v28 = vtanh.pop %v26
    %v29 = vmul.f32 %v25, %v27
    %v30 = vmul.f32 %v26, %v28
    %v31 = vadd.f32 %v25, %v29
    %v32 = vadd.f32 %v26, %v30
    %33 = vst [vmem:[#allocation5] sm:$0xff] %v31
    %34 = vst [vmem:[#allocation5 + $0x8] sm:$0xff] %v32
    // Predicated region
    $region10: #{tpu_custom_call.1} parent=1 // pred_check
      _
    $region11: #{tpu_custom_call.1} parent=1 // pred_check_branch
      %36 = sbr.rel (0) target = $region13
    $region12: #{tpu_custom_call.1} parent=1 // pred_region
      %s38 = ssub.s32 256, 256
      %39 = vsyncadd [#allocation4], %s38
      %s40 = sshll.u32 [#allocation5], 4
      %s41 = int_to_ptr.vmem [resolvable:$true] %s40
      %46 = dma.vmem_to_hbm [thread:$0]  %s41, 256, %s1, [#allocation4], 128, 128, 8
    $region13: #{tpu_custom_call.1} parent=1 // pred_fallthru
      _
    // Predicated region
    $region14: #{tpu_custom_call.1} parent=1 // pred_check
      _
    $region15: #{tpu_custom_call.1} parent=1 // pred_check_branch
      %48 = sbr.rel (0) target = $region17
    $region16: #{tpu_custom_call.1} parent=1 // pred_region
      %49 = dma.done [#allocation4], 256
    $region17: #{tpu_custom_call.1} parent=1 // pred_fallthru
      _
    %50 = vsyncpa [#allocation3], 1
    %51 = vsyncpa [#allocation4], 1

</llo_original>
